<compile_context>
chip_gen: v6e
topology: v6e:2x2x1
jax: 0.10.0
libtpu: 0.0.40
codegen_flags: <defaults>
</compile_context>

<pallas_src>
import jax
import jax.numpy as jnp
from jax.experimental import pallas as pl
from jax.experimental.pallas import tpu as pltpu


def _round_up(x, m):
    return (x + m - 1) // m * m


def _l1_distance_block_kernel(inv_ref, pred_ref, label_ref, out_ref):
    """One grid step: masked L1 over the flattened word-pair axis for TB sentences.

    pred_ref / label_ref : (TB, S*S) in the input dtype (upcast to f32 in VMEM).
    inv_ref / out_ref    : (1, 1, TB) float32 (1/len^2 and normalized loss).
    """
    labels = label_ref[...]
    # Compare in the labels' native dtype (saves one full-block f32 temporary
    # for bf16 inputs); single select instead of two multiply-masks.
    mask = labels != jnp.asarray(-1.0, dtype=labels.dtype)
    preds = pred_ref[...].astype(jnp.float32)
    labels_f = labels.astype(jnp.float32)
    diff = jnp.where(mask, jnp.abs(preds - labels_f), 0.0)
    # With the flattened lane-dense layout this lowers to elementwise (VPU)
    # accumulation of the 128-lane vreg chunks plus one cross-lane (XLU) reduce
    # per sentence row; an explicit (TB, n, 128) reshape would force a relayout.
    per_sent = jnp.sum(diff, axis=1)                     # (TB,)
    # Scale by 1/len^2 (inf for len == 0 preserves the PyTorch divide-by-zero
    # semantics; batch-padding rows carry inv == 0 and per_sent == 0).
    out_ref[...] = per_sent.reshape(out_ref.shape) * inv_ref[...]


def _choose_tb(B, cap_tb, sub_mult):
    """Pick sentences-per-block.

    Preference order:
      1) divisor of B (no batch padding), legal for the (8,128) block rule
         (tb % sub_mult == 0 or tb == B), tb <= cap_tb, and tb < B so the grid
         has >= 2 steps (v7x 2-TC split);
      2) same but allowing tb == B (single block);
      3) fallback: pad the batch (one extra HBM read+write of the inputs) with
         a multiple-of-sub_mult tile minimizing the padding.
    Returns (tb, padded_B).
    """
    cap_tb = max(1, min(cap_tb, max(B, 1)))
    divs = [d for d in range(1, B + 1) if B % d == 0]
    legal = [d for d in divs if d <= cap_tb and (d % sub_mult == 0 or d == B)]
    multi = [d for d in legal if d < B]
    if multi:
        return max(multi), B
    if legal:
        return max(legal), B
    # Fallback: batch padding required.
    best_tb = sub_mult
    best_waste = _round_up(B, best_tb) - B
    t = 2 * sub_mult
    limit = min(cap_tb, 1024)
    while t <= limit:
        waste = _round_up(B, t) - B
        if waste <= best_waste:
            best_tb, best_waste = t, waste
        t += sub_mult
    return best_tb, _round_up(B, best_tb)


def l1_distance_loss(predictions, label_batch, length_batch, *, block_b=None):
    """Pallas implementation of L1DistanceLoss.forward.

    Returns (batch_loss, total_sents) as float32 scalars.  `block_b`, if given,
    caps the number of sentences processed per grid step.
    """
    predictions = jnp.asarray(predictions)
    label_batch = jnp.asarray(label_batch)
    length_batch = jnp.asarray(length_batch).astype(jnp.int32)

    B, S, S2 = predictions.shape
    assert S == S2, "predictions must be [B, S, S]"
    assert label_batch.shape == (B, S, S)
    assert length_batch.shape == (B,)
    SS = S * S

    # Flatten the word-pair plane into a lane-dense last axis (free reshape).
    preds2 = predictions.reshape(B, SS)
    labels2 = label_batch.reshape(B, SS)

    it_p = jnp.dtype(preds2.dtype).itemsize
    it_l = jnp.dtype(labels2.dtype).itemsize
    # Sublane multiple required for a legal non-full second-to-last block dim.
    sub_p = 8 * max(1, 4 // it_p)
    sub_l = 8 * max(1, 4 // it_l)
    sub_mult = max(sub_p, sub_l)

    # Generation-aware VMEM budget (~70% of physical per-core VMEM).
    try:
        vmem_capacity = pltpu.get_tpu_info().vmem_capacity_bytes
    except Exception:
        vmem_capacity = 64 * 1024 * 1024  # conservative (v7x per-TC)
    vmem_budget = int(vmem_capacity * 0.7)

    # Padded per-sentence footprint: double-buffered native inputs + f32
    # upcast/select temporaries (last dim lane-padded to 128).
    padded_ss = _round_up(SS, 128)
    per_sent_bytes = (2 * (it_p + it_l) + 2 * 4) * padded_ss
    slack = 2 * 1024 * 1024
    cap_tb = max(1, (vmem_budget - slack) // per_sent_bytes)
    if block_b is not None:
        cap_tb = min(cap_tb, int(block_b))
    # TODO(synk): if S is ever so large that a single double-buffered sentence
    # exceeds the budget, the S*S axis itself needs tiling; structural-probe
    # sequence lengths are far below that.

    tb, b_pad = _choose_tb(B, cap_tb, sub_mult)
    num_blocks = b_pad // tb

    # Precompute 1/len^2 per sentence (inf for len == 0 matches PyTorch's
    # division by a zero squared length); padding sentences get 0.
    len_f = length_batch.astype(jnp.float32)
    inv_sq_len = 1.0 / (len_f * len_f)
    if b_pad != B:
        pad = b_pad - B
        preds2 = jnp.pad(preds2, ((0, pad), (0, 0)))
        labels2 = jnp.pad(labels2, ((0, pad), (0, 0)), constant_values=-1.0)
        inv_sq_len = jnp.pad(inv_sq_len, (0, pad), constant_values=0.0)
    inv_blocks = inv_sq_len.reshape(num_blocks, 1, tb)

    # Declared VMEM: double-buffered inputs + f32 temporaries + tiny inv/out
    # blocks + scratch slack, capped at the generation-aware budget.
    block_in_bytes = (_round_up(tb, sub_p) * padded_ss * it_p +
                      _round_up(tb, sub_l) * padded_ss * it_l)
    f32_tmp_bytes = 2 * _round_up(tb, 8) * padded_ss * 4
    io_small_bytes = 2 * 2 * _round_up(tb, 128) * 4
    vmem_needed = 2 * block_in_bytes + f32_tmp_bytes + io_small_bytes + (1 << 20)
    vmem_limit = int(min(vmem_budget, max(vmem_needed, 16 * 1024 * 1024)))

    per_sent_norm = pl.pallas_call(
        _l1_distance_block_kernel,
        out_shape=jax.ShapeDtypeStruct((num_blocks, 1, tb), jnp.float32),
        grid_spec=pltpu.PrefetchScalarGridSpec(
            num_scalar_prefetch=0,
            grid=(num_blocks,),
            in_specs=[
                pl.BlockSpec((1, 1, tb), lambda i: (i, 0, 0)),  # 1/len^2
                pl.BlockSpec((tb, SS), lambda i: (i, 0)),       # predictions
                pl.BlockSpec((tb, SS), lambda i: (i, 0)),       # labels
            ],
            out_specs=pl.BlockSpec((1, 1, tb), lambda i: (i, 0, 0)),
        ),
        compiler_params=pltpu.CompilerParams(
            # Each step writes its own output block -> parallel axis (2-TC split
            # on v7x; switch to pltpu.CORE_PARALLEL if a trace shows 1 TC).
            dimension_semantics=("parallel",),
            vmem_limit_bytes=vmem_limit),
    )(inv_blocks, preds2, labels2)

    total_sents = jnp.sum(length_batch != 0).astype(jnp.float32)
    # Padded entries are exactly 0.0, so summing the whole padded output is safe.
    batch_loss = jnp.where(total_sents > 0.0,
                           jnp.sum(per_sent_norm) / total_sents,
                           jnp.float32(0.0))
    return batch_loss, total_sents


def _reference(predictions, label_batch, length_batch):
    mask = (label_batch != -1.0).astype(jnp.float32)
    lps = jnp.sum(jnp.abs(predictions * mask - label_batch * mask), axis=(1, 2))
    sq = (length_batch.astype(jnp.float32)) ** 2
    total = jnp.sum(length_batch != 0).astype(jnp.float32)
    loss = jnp.where(total > 0.0, jnp.sum(lps / sq) / total, 0.0)
    return loss, total


def _make_inputs(key, B, S):
    k_pred, k_lab, k_len = jax.random.split(key, 3)
    length_batch = jax.random.randint(k_len, (B,), minval=1, maxval=S + 1,
                                      dtype=jnp.int32)
    idx = jnp.arange(S)
    valid = ((idx[None, :, None] < length_batch[:, None, None]) &
             (idx[None, None, :] < length_batch[:, None, None]))
    predictions = jax.random.normal(k_pred, (B, S, S), dtype=jnp.float32)
    raw_labels = jnp.abs(jax.random.normal(k_lab, (B, S, S),
                                           dtype=jnp.float32)) * 3.0
    label_batch = jnp.where(valid, raw_labels, -1.0)  # -1 marks padded pairs
    return predictions, label_batch, length_batch


def _check(name, got, want, rtol=1e-5, atol=1e-6):
    got = jax.block_until_ready(got)
    assert jnp.allclose(got, want, rtol=rtol, atol=atol), (name, got, want)


if __name__ == "__main__":
    key = jax.random.PRNGKey(0)
    k1, k2 = jax.random.split(key)

    # Case 1: B=6, S=24 -> tb == B (single block, no padding).
    p1, l1, n1 = _make_inputs(k1, B=6, S=24)
    ref_loss1, ref_total1 = _reference(p1, l1, n1)
    loss1, total1 = l1_distance_loss(p1, l1, n1)
    _check("loss1", loss1, ref_loss1)
    _check("total1", total1, ref_total1)

    # Case 2: B=16, S=24 -> tb=8 (divisor of B, 2 grid steps, no padding).
    p2, l2, n2 = _make_inputs(k2, B=16, S=24)
    ref_loss2, ref_total2 = _reference(p2, l2, n2)
    loss2, total2 = l1_distance_loss(p2, l2, n2)
    _check("loss2", loss2, ref_loss2)
    _check("total2", total2, ref_total2)

    # Case 3: force the padding fallback path (block_b cap with no legal divisor).
    loss3, total3 = l1_distance_loss(p1, l1, n1, block_b=4)
    _check("loss3", loss3, ref_loss1)
    _check("total3", total3, ref_total1)

    print("KERNEL_OK")
</pallas_src>

<mosaic_0001>
module attributes {stable_mosaic.version = 11 : i64} {
  func.func @_l1_distance_block_kernel(%arg0: i32, %arg1: memref<1x1x6xf32, #tpu.memory_space<vmem>>, %arg2: memref<6x576xf32, #tpu.memory_space<vmem>>, %arg3: memref<6x576xf32, #tpu.memory_space<vmem>>, %arg4: memref<1x1x6xf32, #tpu.memory_space<vmem>>) attributes {dimension_semantics = [#tpu.dimension_semantics<parallel>], iteration_bounds = array<i64: 1>, scalar_prefetch = 0 : i64, scratch_operands = 0 : i64, tpu.core_type = #tpu.core_type<tc>, window_params = [{transform_indices = @transform_0, window_bounds = array<i64: 1, 1, 6>}, {transform_indices = @transform_1, window_bounds = array<i64: 6, 576>}, {transform_indices = @transform_2, window_bounds = array<i64: 6, 576>}, {transform_indices = @transform_3, window_bounds = array<i64: 1, 1, 6>}]} {
    %c0 = arith.constant 0 : index
    %c0_0 = arith.constant 0 : index
    %0 = vector.load %arg3[%c0, %c0_0] : memref<6x576xf32, #tpu.memory_space<vmem>>, vector<6x576xf32>
    %cst = arith.constant -1.000000e+00 : f32
    %1 = vector.broadcast %cst : f32 to vector<6x576xf32>
    %2 = arith.cmpf one, %0, %1 : vector<6x576xf32>
    %c0_1 = arith.constant 0 : index
    %c0_2 = arith.constant 0 : index
    %3 = vector.load %arg2[%c0_1, %c0_2] : memref<6x576xf32, #tpu.memory_space<vmem>>, vector<6x576xf32>
    %4 = arith.subf %3, %0 : vector<6x576xf32>
    %5 = math.absf %4 : vector<6x576xf32>
    %cst_3 = arith.constant 0.000000e+00 : f32
    %6 = vector.broadcast %cst_3 : f32 to vector<6x576xf32>
    %7 = arith.select %2, %5, %6 : vector<6x576xi1>, vector<6x576xf32>
    %cst_4 = arith.constant dense<0.000000e+00> : vector<6xf32>
    %8 = vector.multi_reduction <add>, %7, %cst_4 [1] : vector<6x576xf32> to vector<6xf32>
    %9 = vector.shape_cast %8 : vector<6xf32> to vector<1x1x6xf32>
    %c0_5 = arith.constant 0 : index
    %c0_6 = arith.constant 0 : index
    %c0_7 = arith.constant 0 : index
    %10 = vector.load %arg1[%c0_5, %c0_6, %c0_7] : memref<1x1x6xf32, #tpu.memory_space<vmem>>, vector<1x1x6xf32>
    %11 = arith.mulf %9, %10 : vector<1x1x6xf32>
    %c0_8 = arith.constant 0 : index
    %c0_9 = arith.constant 0 : index
    %c0_10 = arith.constant 0 : index
    %12 = vector.load %arg4[%c0_8, %c0_9, %c0_10] : memref<1x1x6xf32, #tpu.memory_space<vmem>>, vector<1x1x6xf32>
    tpu.vector_store %arg4[%c0_8, %c0_9, %c0_10], %11 {strides = array<i32>} : memref<1x1x6xf32, #tpu.memory_space<vmem>>, vector<1x1x6xf32>,
    return
  }
  func.func @transform_0(%arg0: i32) -> (i32, i32, i32) {
    %c0_i32 = arith.constant 0 : i32
    %c0_i32_0 = arith.constant 0 : i32
    %c0_i32_1 = arith.constant 0 : i32
    return %arg0, %c0_i32, %c0_i32_0 : i32, i32, i32
  }
  func.func @transform_1(%arg0: i32) -> (i32, i32) {
    %c0_i32 = arith.constant 0 : i32
    %c0_i32_0 = arith.constant 0 : i32
    return %arg0, %c0_i32 : i32, i32
  }
  func.func @transform_2(%arg0: i32) -> (i32, i32) {
    %c0_i32 = arith.constant 0 : i32
    %c0_i32_0 = arith.constant 0 : i32
    return %arg0, %c0_i32 : i32, i32
  }
  func.func @transform_3(%arg0: i32) -> (i32, i32, i32) {
    %c0_i32 = arith.constant 0 : i32
    %c0_i32_0 = arith.constant 0 : i32
    %c0_i32_1 = arith.constant 0 : i32
    return %arg0, %c0_i32, %c0_i32_0 : i32, i32, i32
  }
}

</mosaic_0001>

<llo_original>
// kernel: tpu_custom_call.1
$region0: #{tpu_custom_call.1}
  #allocation0 [shape = 'u32[]', space=smem, size = 0x4, offset = 0x4, fixed_abs, tag = 'smem constant byte address 0x4 - core index']
  #allocation1 [shape = 'u32[144,128]{1,0:T(1,128)}', space=vmem, size = 0x12000, scoped, tag = 'internal scratch']
  %s0 = inlined_call_operand.hbm [shape: f32[1,1,6], index: 0, kind: input, shape index: {}]
  %s1 = inlined_call_operand.hbm [shape: f32[6,576], index: 1, kind: input, shape index: {}]
  %s2 = inlined_call_operand.hbm [shape: f32[6,576], index: 2, kind: input, shape index: {}]
  %s3 = inlined_call_operand.hbm [shape: f32[1,1,6], index: 3, kind: output, shape index: {}]
  %s4 = sld [smem:[#allocation0]]
  $region34: #{tpu_custom_call.1} parent=0
    _
  %s6 = ssub.s32 1, %s4
  %s7 = scalar_select 0, %s6, %s4
  $region1: #{tpu_custom_call.1} parent=0
    #allocation2 [shape = 'u8[512]{0}', space=vmem, size = 0x400, scoped, tag = 'input window, operand 0, single buffered']
    #allocation3 [shape = 's32[1]{0}', space=sflag, size = 0x4, scoped, tag = 'scoped memory for tpu_custom_call.1']
    #allocation4 [shape = 's32[1]{0}', space=sflag, size = 0x4, scoped, tag = 'scoped memory for tpu_custom_call.1']
    #allocation5 [shape = 'u8[20480]{0}', space=vmem, size = 0x5000, scoped, tag = 'input window, operand 1, single buffered']
    #allocation6 [shape = 's32[1]{0}', space=sflag, size = 0x4, scoped, tag = 'scoped memory for tpu_custom_call.1']
    #allocation7 [shape = 'u8[20480]{0}', space=vmem, size = 0x5000, scoped, tag = 'input window, operand 2, single buffered']
    #allocation8 [shape = 'u8[512]{0}', space=vmem, size = 0x400, scoped, tag = 'output window, operand 0, single buffered']
    %8 = vsyncpa [#allocation3], 0
    %9 = vsyncpa [#allocation6], 0
    %10 = vsyncpa [#allocation4], 0
    // Predicated region
    $region2: #{tpu_custom_call.1} parent=1 // pred_check
      _
    $region3: #{tpu_custom_call.1} parent=1 // pred_check_branch
      %12 = sbr.rel (0) target = $region5
    $region4: #{tpu_custom_call.1} parent=1 // pred_region
      %s14 = ssub.s32 16, 16
      %15 = vsyncadd [#allocation3], %s14
      %s17 = sshll.u32 [#allocation2], 4
      %s18 = int_to_ptr.vmem [resolvable:$true] %s17
      %20 = dma.hbm_to_vmem [thread:$0]  %s0, 16, %s18, [#allocation3]
    $region5: #{tpu_custom_call.1} parent=1 // pred_fallthru
      _
    // Predicated region
    $region6: #{tpu_custom_call.1} parent=1 // pred_check
      _
    $region7: #{tpu_custom_call.1} parent=1 // pred_check_branch
      %22 = sbr.rel (0) target = $region9
    $region8: #{tpu_custom_call.1} parent=1 // pred_region
      %s24 = ssub.s32 640, 640
      %25 = vsyncadd [#allocation6], %s24
      %s27 = sshll.u32 [#allocation5], 4
      %s28 = int_to_ptr.vmem [resolvable:$true] %s27
      %30 = dma.hbm_to_vmem [thread:$0]  %s1, 640, %s28, [#allocation6]
    $region9: #{tpu_custom_call.1} parent=1 // pred_fallthru
      _
    // Predicated region
    $region10: #{tpu_custom_call.1} parent=1 // pred_check
      _
    $region11: #{tpu_custom_call.1} parent=1 // pred_check_branch
      %32 = sbr.rel (0) target = $region13
    $region12: #{tpu_custom_call.1} parent=1 // pred_region
      %s34 = ssub.s32 640, 640
      %35 = vsyncadd [#allocation6], %s34
      %s37 = sshll.u32 [#allocation7], 4
      %s38 = int_to_ptr.vmem [resolvable:$true] %s37
      %40 = dma.hbm_to_vmem [thread:$0]  %s2, 640, %s38, [#allocation6]
    $region13: #{tpu_custom_call.1} parent=1 // pred_fallthru
      _
    // Predicated region
    $region14: #{tpu_custom_call.1} parent=1 // pred_check
      _
    $region15: #{tpu_custom_call.1} parent=1 // pred_check_branch
      %42 = sbr.rel (0) target = $region17
    $region16: #{tpu_custom_call.1} parent=1 // pred_region
      %43 = dma.done [#allocation3], 16
    $region17: #{tpu_custom_call.1} parent=1 // pred_fallthru
      _
    // Predicated region
    $region18: #{tpu_custom_call.1} parent=1 // pred_check
      _
    $region19: #{tpu_custom_call.1} parent=1 // pred_check_branch
      %45 = sbr.rel (0) target = $region21
    $region20: #{tpu_custom_call.1} parent=1 // pred_region
      %46 = dma.done [#allocation6], 640
    $region21: #{tpu_custom_call.1} parent=1 // pred_fallthru
      _
    // Predicated region
    $region22: #{tpu_custom_call.1} parent=1 // pred_check
      _
    $region23: #{tpu_custom_call.1} parent=1 // pred_check_branch
      %48 = sbr.rel (0) target = $region25
    $region24: #{tpu_custom_call.1} parent=1 // pred_region
      %49 = dma.done [#allocation6], 640
    $region25: #{tpu_custom_call.1} parent=1 // pred_fallthru
      _
    %v50 = vld [vmem:[#allocation7] sm:$0x3f]
    %v51 = vld [vmem:[#allocation7 + $0x8] sm:$0x3f]
    %v52 = vld [vmem:[#allocation7 + $0x10] sm:$0x3f]
    %v53 = vld [vmem:[#allocation7 + $0x18] sm:$0x3f]
    %v54 = vld [vmem:[#allocation7 + $0x20] sm:$0x3f]
    %vm55 = vcmp.ne.f32.partialorder %v50, -1.0
    %vm56 = vcmp.ne.f32.partialorder %v51, -1.0
    %vm57 = vcmp.ne.f32.partialorder %v52, -1.0
    %vm58 = vcmp.ne.f32.partialorder %v53, -1.0
    %vm59 = vcmp.ne.f32.partialorder %v54, -1.0
    %v60 = vld [vmem:[#allocation5] sm:$0x3f]
    %v61 = vld [vmem:[#allocation5 + $0x8] sm:$0x3f]
    %v62 = vld [vmem:[#allocation5 + $0x10] sm:$0x3f]
    %v63 = vld [vmem:[#allocation5 + $0x18] sm:$0x3f]
    %v64 = vld [vmem:[#allocation5 + $0x20] sm:$0x3f]
    %v65 = vsub.f32 %v60, %v50
    %v66 = vsub.f32 %v61, %v51
    %v67 = vsub.f32 %v62, %v52
    %v68 = vsub.f32 %v63, %v53
    %v69 = vsub.f32 %v64, %v54
    %v70 = vand.u32 2147483647, %v65
    %v71 = vand.u32 2147483647, %v66
    %v72 = vand.u32 2147483647, %v67
    %v73 = vand.u32 2147483647, %v68
    %v74 = vand.u32 2147483647, %v69
    %v75 = vsel %vm55, %v70, 0.0
    %v76 = vsel %vm56, %v71, 0.0
    %v77 = vsel %vm57, %v72, 0.0
    %v78 = vsel %vm58, %v73, 0.0
    %v79 = vsel %vm59, %v74, 0.0
    %vm80 = vcmask 1045504
    %v81 = vsel %vm80, %v75, 0.0
    %v82 = vsel %vm80, %v76, 0.0
    %v83 = vadd.f32 %v81, %v82
    %v84 = vsel %vm80, %v77, 0.0
    %v85 = vadd.f32 %v83, %v84
    %v86 = vsel %vm80, %v78, 0.0
    %v87 = vadd.f32 %v85, %v86
    %vm88 = vcmask 521216
    %v89 = vsel %vm88, %v79, 0.0
    %v90 = vadd.f32 %v87, %v89
    %91 = vadd.xlane.f32.xlu0 %v90
    %v92 = vpop.xlane.xlu0 %91
    %v93 = vld [vmem:[#allocation2] sm:$0x1]
    %v95 = vlaneseq
    %v96 = vshrl.u32 %v95, 7
    %v97 = vsub.s32 0, %v96
    %v98 = vrot.slane %v93, %v97
    %100 = vbcast.lane.b32.xlu0 %v98, 256
    %v101 = vpop.permute.xlu0 %100
    %v103 = vmul.f32 %v92, %v101
    %105 = vset.pattern.permute.xlu0 0
    %106 = vperm.xlu0 %105, %v103
    %v107 = vpop.permute.xlu0 %106
    %v108 = vlaneseq
    %v109 = vand.u32 %v108, 127
    %v110 = vlaneseq
    %v111 = vshrl.u32 %v110, 7
    %v112 = vsub.s32 %v109, %v111
    %v113 = vrot.slane %v107, %v112
    %vm115 = vcmask 40960
    %116 = vst.msk [vmem:[#allocation8] sm:$0x1] %vm115, %v113
    // Predicated region
    $region26: #{tpu_custom_call.1} parent=1 // pred_check
      _
    $region27: #{tpu_custom_call.1} parent=1 // pred_check_branch
      %118 = sbr.rel (0) target = $region29
    $region28: #{tpu_custom_call.1} parent=1 // pred_region
      %s120 = ssub.s32 16, 16
      %121 = vsyncadd [#allocation4], %s120
      %s123 = sshll.u32 [#allocation8], 4
      %s124 = int_to_ptr.vmem [resolvable:$true] %s123
      %126 = dma.vmem_to_hbm [thread:$0]  %s124, 16, %s3, [#allocation4]
    $region29: #{tpu_custom_call.1} parent=1 // pred_fallthru
      _
    // Predicated region
    $region30: #{tpu_custom_call.1} parent=1 // pred_check
      _
    $region31: #{tpu_custom_call.1} parent=1 // pred_check_branch
      %128 = sbr.rel (0) target = $region33
    $region32: #{tpu_custom_call.1} parent=1 // pred_region
      %129 = dma.done [#allocation4], 16
    $region33: #{tpu_custom_call.1} parent=1 // pred_fallthru
      _
    %130 = vsyncpa [#allocation3], 1
    %131 = vsyncpa [#allocation6], 1
    %132 = vsyncpa [#allocation4], 1

</llo_original>
